<compile_context>
chip_gen: v7x
topology: tpu7x:2x2x1
jax: 0.10.0
libtpu: 0.0.40
codegen_flags: <defaults>
</compile_context>

<pallas_src>
import jax
import jax.numpy as jnp
from jax.experimental import pallas as pl
from jax.experimental.pallas import tpu as pltpu

_LANES = 128      # vreg lane width
_SUBLANES = 8     # f32 vreg sublane count


def _round_up(x, m):
    return ((x + m - 1) // m) * m


def _cdiv(a, b):
    return -(-a // b)


def _to(v, dt):
    # Cast only when needed (no-op casts are dropped at trace time anyway).
    return v if v.dtype == dt else v.astype(dt)


def _actor_kernel(ma_ref, x_ref, w1_ref, b1_ref, w2_ref, b2_ref, w3_ref, b3_ref,
                  o_ref):
    """One batch tile of the fused 3-layer MLP.

    Weights are VMEM-resident across grid steps (constant index_map). MXU
    operands follow the weight dtype (bf16 by default); bias add / ReLU / tanh
    and accumulation are f32 on the VPU/EUP.
    """
    max_action = ma_ref[0]            # SMEM scalar
    mxu_dt = w1_ref.dtype

    x = x_ref[...]
    h1 = jnp.dot(_to(x, mxu_dt), w1_ref[...], preferred_element_type=jnp.float32)
    h1 = jnp.maximum(h1 + b1_ref[...], 0.0)                      # ReLU

    h2 = jnp.dot(_to(h1, mxu_dt), w2_ref[...], preferred_element_type=jnp.float32)
    h2 = jnp.maximum(h2 + b2_ref[...], 0.0)                      # ReLU

    a = jnp.dot(_to(h2, mxu_dt), w3_ref[...], preferred_element_type=jnp.float32)
    a = jnp.tanh(a + b3_ref[...])                                # Tanh

    # Lane-dense (tb, k*128) unmasked store.
    o_ref[...] = (max_action * a).astype(o_ref.dtype)


def prepare_actor_params(params, *, weights_dtype=jnp.bfloat16):
    """One-time host-side parameter prep (call once, reuse across forwards):

      * pad w3/b3 output dim up to a multiple of 128 (lane-dense final store;
        the padded columns produce tanh(0)*max_action = 0 and are sliced off)
      * cast weights (not biases) to `weights_dtype` (bf16 default: halves
        weight DMA and runs the MXU at its native rate; accumulation is f32)

    Returns a new dict also carrying the original action_dim.
    """
    w1, b1, w2, b2, w3, b3 = (params[k] for k in ("w1", "b1", "w2", "b2", "w3", "b3"))
    action_dim = w3.shape[1]
    a_pad = _round_up(action_dim, _LANES)
    if a_pad != action_dim:
        w3 = jnp.pad(w3, ((0, 0), (0, a_pad - action_dim)))
        b3 = jnp.pad(b3, ((0, 0), (0, a_pad - action_dim)))
    if weights_dtype is not None:
        w1, w2, w3 = (w.astype(weights_dtype) for w in (w1, w2, w3))
    return {"w1": w1, "b1": b1, "w2": w2, "b2": b2, "w3": w3, "b3": b3,
            "action_dim": action_dim}


def _default_batch_tile():
    """256 rows on v5e (single vst slot, 128-wide MXU), 512 on v6e/v7x."""
    try:
        kind = jax.devices()[0].device_kind.lower()
        if "v5 lite" in kind or "v5e" in kind or "v5litepod" in kind:
            return 256
    except Exception:
        pass
    return 512


def _choose_tiling(B, batch_tile):
    """Pick (tile rows, padded batch, grid steps).

    * each tile has <= batch_tile rows (rounded to a sublane multiple)
    * at least 2 grid steps whenever B allows, so v7x's two TensorCores both
      get work on the "parallel" batch axis
    * tiles sized to ~B/n_steps rather than a full batch_tile, minimizing dead
      padded-row compute for awkward batch sizes (e.g. B=129 -> 2 x 72 rows)
    """
    batch_tile = max(_SUBLANES, _round_up(batch_tile, _SUBLANES))
    min_steps = 2 if B > _SUBLANES else 1
    n_steps = max(min_steps, _cdiv(B, batch_tile))
    tb = _round_up(_cdiv(B, n_steps), _SUBLANES)
    return tb, n_steps * tb, n_steps


# Flipped to False at runtime if this jax build rejects pl.Buffered(1) on
# pallas_call BlockSpecs; the fallback is the default double-buffered weights.
_SINGLE_BUFFER_WEIGHTS = True


def _pallas_forward(ma, state_pad, w1, b1, w2, b2, w3, b3, tb, n_steps,
                    single_buffer_weights):
    b_pad, state_dim = state_pad.shape
    hidden = w1.shape[1]
    a_pad = w3.shape[1]

    # Constant index_map -> the block never changes, weights stay VMEM-resident
    # across grid steps. With single buffering they occupy exactly one buffer.
    wmode = {"pipeline_mode": pl.Buffered(1)} if single_buffer_weights else {}
    const = lambda i, ma: (0, 0)

    return pl.pallas_call(
        _actor_kernel,
        out_shape=jax.ShapeDtypeStruct((b_pad, a_pad), jnp.float32),
        grid_spec=pltpu.PrefetchScalarGridSpec(
            num_scalar_prefetch=1,
            grid=(n_steps,),
            in_specs=[
                # Batch-tiled activations (auto double-buffered / pipelined).
                pl.BlockSpec((tb, state_dim), lambda i, ma: (i, 0)),
                # Weights / biases: VMEM-resident across steps.
                pl.BlockSpec((state_dim, hidden), const, **wmode),
                pl.BlockSpec((1, hidden), const, **wmode),
                pl.BlockSpec((hidden, hidden), const, **wmode),
                pl.BlockSpec((1, hidden), const, **wmode),
                pl.BlockSpec((hidden, a_pad), const, **wmode),
                pl.BlockSpec((1, a_pad), const, **wmode),
            ],
            out_specs=pl.BlockSpec((tb, a_pad), lambda i, ma: (i, 0)),
        ),
        compiler_params=pltpu.CompilerParams(
            dimension_semantics=("parallel",)),
    )(ma, state_pad, w1, b1, w2, b2, w3, b3)


def actor_forward(state, params, max_action, *, batch_tile=None):
    """state: (B, state_dim) f32. params: raw or prepare_actor_params() output.
    Returns (B, action_dim) f32."""
    global _SINGLE_BUFFER_WEIGHTS

    prepared = params if "action_dim" in params else prepare_actor_params(params)
    w1, b1 = prepared["w1"], prepared["b1"]
    w2, b2 = prepared["w2"], prepared["b2"]
    w3, b3 = prepared["w3"], prepared["b3"]
    action_dim = prepared["action_dim"]

    B, _ = state.shape
    if batch_tile is None:
        batch_tile = _default_batch_tile()
    tb, b_pad, n_steps = _choose_tiling(B, batch_tile)
    if b_pad != B:
        state = jnp.pad(state, ((0, b_pad - B), (0, 0)))

    ma = jnp.asarray([max_action], dtype=jnp.float32)   # SMEM scalar prefetch

    if _SINGLE_BUFFER_WEIGHTS:
        try:
            out = _pallas_forward(ma, state, w1, b1, w2, b2, w3, b3,
                                  tb, n_steps, True)
            return out[:B, :action_dim]
        except Exception:
            # Buffered(1) not accepted by this build; use default buffering.
            _SINGLE_BUFFER_WEIGHTS = False
    out = _pallas_forward(ma, state, w1, b1, w2, b2, w3, b3, tb, n_steps, False)
    return out[:B, :action_dim]


def init_actor_params(key, state_dim, action_dim, hidden=256):
    """Deterministic init mimicking PyTorch Linear default: U[-1/sqrt(fan_in), 1/sqrt(fan_in)]."""
    ks = jax.random.split(key, 6)

    def lin(kw, kb, fan_in, fan_out):
        bound = 1.0 / jnp.sqrt(fan_in)
        w = jax.random.uniform(kw, (fan_in, fan_out), jnp.float32, -bound, bound)
        b = jax.random.uniform(kb, (1, fan_out), jnp.float32, -bound, bound)
        return w, b

    w1, b1 = lin(ks[0], ks[1], state_dim, hidden)
    w2, b2 = lin(ks[2], ks[3], hidden, hidden)
    w3, b3 = lin(ks[4], ks[5], hidden, action_dim)
    return {"w1": w1, "b1": b1, "w2": w2, "b2": b2, "w3": w3, "b3": b3}


def actor_reference(state, params, max_action):
    """Pure-JAX reference for correctness checking."""
    h = jnp.maximum(state @ params["w1"] + params["b1"], 0.0)
    h = jnp.maximum(h @ params["w2"] + params["b2"], 0.0)
    return max_action * jnp.tanh(h @ params["w3"] + params["b3"])


if __name__ == "__main__":
    key = jax.random.PRNGKey(0)
    k_param, k_state, k_state2 = jax.random.split(key, 3)

    state_dim, action_dim, max_action = 16, 8, 2.0
    params = init_actor_params(k_param, state_dim, action_dim)   # hidden=256 per module

    # Exact-parity path (f32 weights and activations on the MXU).
    params_f32 = prepare_actor_params(params, weights_dtype=jnp.float32)
    # Default fast path: bf16 weights + bf16 MXU activations, f32 accumulation.
    params_bf16 = prepare_actor_params(params)

    # Small inference-style batch (B=2): single 8-row grid step.
    state_small = jax.random.normal(k_state, (2, state_dim), dtype=jnp.float32)
    out_small = jax.block_until_ready(actor_forward(state_small, params_f32, max_action))
    ref_small = actor_reference(state_small, params, max_action)
    assert out_small.shape == (2, action_dim)
    assert jnp.allclose(out_small, ref_small, atol=1e-5, rtol=1e-5), "B=2 f32 mismatch"

    # Awkward batch (B=129): balanced 2-step grid (2 x 72 rows, not 2 x 128),
    # VMEM-resident weights, both v7x TensorCores usable on the parallel axis.
    state_big = jax.random.normal(k_state2, (129, state_dim), dtype=jnp.float32)
    out_big = jax.block_until_ready(actor_forward(state_big, params_f32, max_action))
    ref_big = actor_reference(state_big, params, max_action)
    assert out_big.shape == (129, action_dim)
    assert jnp.allclose(out_big, ref_big, atol=1e-5, rtol=1e-5), "B=129 f32 mismatch"

    # Default bf16-weight path (half the weight DMA, MXU-native dtype).
    # Activations also enter the MXU as bf16 -> looser tolerance vs. f32 ref.
    out_bf16 = jax.block_until_ready(actor_forward(state_big, params_bf16, max_action))
    assert out_bf16.shape == (129, action_dim)
    assert jnp.allclose(out_bf16, ref_big, atol=1e-1, rtol=1e-1), "B=129 bf16 mismatch"

    print("KERNEL_OK")
</pallas_src>

<mosaic_0001>
module attributes {stable_mosaic.version = 11 : i64} {
  func.func @_actor_kernel(%arg0: i32, %arg1: memref<1xf32, #tpu.memory_space<smem>>, %arg2: memref<8x16xf32, #tpu.memory_space<vmem>>, %arg3: memref<16x256xf32, #tpu.memory_space<vmem>>, %arg4: memref<1x256xf32, #tpu.memory_space<vmem>>, %arg5: memref<256x256xf32, #tpu.memory_space<vmem>>, %arg6: memref<1x256xf32, #tpu.memory_space<vmem>>, %arg7: memref<256x128xf32, #tpu.memory_space<vmem>>, %arg8: memref<1x128xf32, #tpu.memory_space<vmem>>, %arg9: memref<8x128xf32, #tpu.memory_space<vmem>>) attributes {dimension_semantics = [#tpu.dimension_semantics<parallel>], iteration_bounds = array<i64: 1>, scalar_prefetch = 1 : i64, scratch_operands = 0 : i64, tpu.core_type = #tpu.core_type<tc>, window_params = [{transform_indices = @transform_0, window_bounds = array<i64: 8, 16>}, {pipeline_mode = #tpu.pipeline_mode<synchronous>, transform_indices = @transform_1, window_bounds = array<i64: 16, 256>}, {pipeline_mode = #tpu.pipeline_mode<synchronous>, transform_indices = @transform_2, window_bounds = array<i64: 1, 256>}, {pipeline_mode = #tpu.pipeline_mode<synchronous>, transform_indices = @transform_3, window_bounds = array<i64: 256, 256>}, {pipeline_mode = #tpu.pipeline_mode<synchronous>, transform_indices = @transform_4, window_bounds = array<i64: 1, 256>}, {pipeline_mode = #tpu.pipeline_mode<synchronous>, transform_indices = @transform_5, window_bounds = array<i64: 256, 128>}, {pipeline_mode = #tpu.pipeline_mode<synchronous>, transform_indices = @transform_6, window_bounds = array<i64: 1, 128>}, {transform_indices = @transform_7, window_bounds = array<i64: 8, 128>}]} {
    %c0 = arith.constant 0 : index
    %0 = memref.load %arg1[%c0] : memref<1xf32, #tpu.memory_space<smem>>
    %c0_0 = arith.constant 0 : index
    %c0_1 = arith.constant 0 : index
    %1 = vector.load %arg2[%c0_0, %c0_1] : memref<8x16xf32, #tpu.memory_space<vmem>>, vector<8x16xf32>
    %c0_2 = arith.constant 0 : index
    %c0_3 = arith.constant 0 : index
    %2 = vector.load %arg3[%c0_2, %c0_3] : memref<16x256xf32, #tpu.memory_space<vmem>>, vector<16x256xf32>
    %cst = arith.constant dense<0.000000e+00> : vector<8x256xf32>
    %3 = tpu.matmul %1, %2, %cst {dimension_numbers = #tpu.dot_dimension_numbers<[1], [0], [0], [1], [0, 0, 1, 1], [], []>} : vector<8x16xf32>, vector<16x256xf32>, vector<8x256xf32> -> vector<8x256xf32>
    %c0_4 = arith.constant 0 : index
    %c0_5 = arith.constant 0 : index
    %4 = vector.load %arg4[%c0_4, %c0_5] : memref<1x256xf32, #tpu.memory_space<vmem>>, vector<1x256xf32>
    %5 = vector.broadcast %4 : vector<1x256xf32> to vector<8x256xf32>
    %6 = arith.addf %3, %5 : vector<8x256xf32>
    %cst_6 = arith.constant 0.000000e+00 : f32
    %7 = vector.broadcast %cst_6 : f32 to vector<8x256xf32>
    %8 = arith.maximumf %6, %7 : vector<8x256xf32>
    %c0_7 = arith.constant 0 : index
    %c0_8 = arith.constant 0 : index
    %9 = vector.load %arg5[%c0_7, %c0_8] : memref<256x256xf32, #tpu.memory_space<vmem>>, vector<256x256xf32>
    %cst_9 = arith.constant dense<0.000000e+00> : vector<8x256xf32>
    %10 = tpu.matmul %8, %9, %cst_9 {dimension_numbers = #tpu.dot_dimension_numbers<[1], [0], [0], [1], [0, 0, 1, 1], [], []>} : vector<8x256xf32>, vector<256x256xf32>, vector<8x256xf32> -> vector<8x256xf32>
    %c0_10 = arith.constant 0 : index
    %c0_11 = arith.constant 0 : index
    %11 = vector.load %arg6[%c0_10, %c0_11] : memref<1x256xf32, #tpu.memory_space<vmem>>, vector<1x256xf32>
    %12 = vector.broadcast %11 : vector<1x256xf32> to vector<8x256xf32>
    %13 = arith.addf %10, %12 : vector<8x256xf32>
    %cst_12 = arith.constant 0.000000e+00 : f32
    %14 = vector.broadcast %cst_12 : f32 to vector<8x256xf32>
    %15 = arith.maximumf %13, %14 : vector<8x256xf32>
    %c0_13 = arith.constant 0 : index
    %c0_14 = arith.constant 0 : index
    %16 = vector.load %arg7[%c0_13, %c0_14] : memref<256x128xf32, #tpu.memory_space<vmem>>, vector<256x128xf32>
    %cst_15 = arith.constant dense<0.000000e+00> : vector<8x128xf32>
    %17 = tpu.matmul %15, %16, %cst_15 {dimension_numbers = #tpu.dot_dimension_numbers<[1], [0], [0], [1], [0, 0, 1, 1], [], []>} : vector<8x256xf32>, vector<256x128xf32>, vector<8x128xf32> -> vector<8x128xf32>
    %c0_16 = arith.constant 0 : index
    %c0_17 = arith.constant 0 : index
    %18 = vector.load %arg8[%c0_16, %c0_17] : memref<1x128xf32, #tpu.memory_space<vmem>>, vector<1x128xf32>
    %19 = vector.broadcast %18 : vector<1x128xf32> to vector<8x128xf32>
    %20 = arith.addf %17, %19 : vector<8x128xf32>
    %21 = math.tanh %20 : vector<8x128xf32>
    %22 = vector.broadcast %0 : f32 to vector<8x128xf32>
    %23 = arith.mulf %22, %21 : vector<8x128xf32>
    %c0_18 = arith.constant 0 : index
    %c0_19 = arith.constant 0 : index
    %24 = vector.load %arg9[%c0_18, %c0_19] : memref<8x128xf32, #tpu.memory_space<vmem>>, vector<8x128xf32>
    tpu.vector_store %arg9[%c0_18, %c0_19], %23 {strides = array<i32>} : memref<8x128xf32, #tpu.memory_space<vmem>>, vector<8x128xf32>,
    return
  }
  func.func @transform_0(%arg0: i32, %arg1: memref<1xf32, #tpu.memory_space<smem>>) -> (i32, i32) {
    %c0_i32 = arith.constant 0 : i32
    %c0_i32_0 = arith.constant 0 : i32
    return %arg0, %c0_i32 : i32, i32
  }
  func.func @transform_1(%arg0: i32, %arg1: memref<1xf32, #tpu.memory_space<smem>>) -> (i32, i32) {
    %c0_i32 = arith.constant 0 : i32
    %c0_i32_0 = arith.constant 0 : i32
    %c0_i32_1 = arith.constant 0 : i32
    return %c0_i32, %c0_i32_0 : i32, i32
  }
  func.func @transform_2(%arg0: i32, %arg1: memref<1xf32, #tpu.memory_space<smem>>) -> (i32, i32) {
    %c0_i32 = arith.constant 0 : i32
    %c0_i32_0 = arith.constant 0 : i32
    %c0_i32_1 = arith.constant 0 : i32
    return %c0_i32, %c0_i32_0 : i32, i32
  }
  func.func @transform_3(%arg0: i32, %arg1: memref<1xf32, #tpu.memory_space<smem>>) -> (i32, i32) {
    %c0_i32 = arith.constant 0 : i32
    %c0_i32_0 = arith.constant 0 : i32
    %c0_i32_1 = arith.constant 0 : i32
    return %c0_i32, %c0_i32_0 : i32, i32
  }
  func.func @transform_4(%arg0: i32, %arg1: memref<1xf32, #tpu.memory_space<smem>>) -> (i32, i32) {
    %c0_i32 = arith.constant 0 : i32
    %c0_i32_0 = arith.constant 0 : i32
    %c0_i32_1 = arith.constant 0 : i32
    return %c0_i32, %c0_i32_0 : i32, i32
  }
  func.func @transform_5(%arg0: i32, %arg1: memref<1xf32, #tpu.memory_space<smem>>) -> (i32, i32) {
    %c0_i32 = arith.constant 0 : i32
    %c0_i32_0 = arith.constant 0 : i32
    %c0_i32_1 = arith.constant 0 : i32
    return %c0_i32, %c0_i32_0 : i32, i32
  }
  func.func @transform_6(%arg0: i32, %arg1: memref<1xf32, #tpu.memory_space<smem>>) -> (i32, i32) {
    %c0_i32 = arith.constant 0 : i32
    %c0_i32_0 = arith.constant 0 : i32
    %c0_i32_1 = arith.constant 0 : i32
    return %c0_i32, %c0_i32_0 : i32, i32
  }
  func.func @transform_7(%arg0: i32, %arg1: memref<1xf32, #tpu.memory_space<smem>>) -> (i32, i32) {
    %c0_i32 = arith.constant 0 : i32
    %c0_i32_0 = arith.constant 0 : i32
    return %arg0, %c0_i32 : i32, i32
  }
}

module attributes {stable_mosaic.version = 11 : i64} {
  func.func @_actor_kernel(%arg0: i32, %arg1: memref<1xf32, #tpu.memory_space<smem>>, %arg2: memref<8x16xf32, #tpu.memory_space<vmem>>, %arg3: memref<16x256xf32, #tpu.memory_space<vmem>>, %arg4: memref<1x256xf32, #tpu.memory_space<vmem>>, %arg5: memref<256x256xf32, #tpu.memory_space<vmem>>, %arg6: memref<1x256xf32, #tpu.memory_space<vmem>>, %arg7: memref<256x128xf32, #tpu.memory_space<vmem>>, %arg8: memref<1x128xf32, #tpu.memory_space<vmem>>, %arg9: memref<8x128xf32, #tpu.memory_space<vmem>>) attributes {dimension_semantics = [#tpu.dimension_semantics<parallel>], iteration_bounds = array<i64: 1>, scalar_prefetch = 1 : i64, scratch_operands = 0 : i64, tpu.core_type = #tpu.core_type<tc>, window_params = [{transform_indices = @transform_0, window_bounds = array<i64: 8, 16>}, {pipeline_mode = #tpu.pipeline_mode<synchronous>, transform_indices = @transform_1, window_bounds = array<i64: 16, 256>}, {pipeline_mode = #tpu.pipeline_mode<synchronous>, transform_indices = @transform_2, window_bounds = array<i64: 1, 256>}, {pipeline_mode = #tpu.pipeline_mode<synchronous>, transform_indices = @transform_3, window_bounds = array<i64: 256, 256>}, {pipeline_mode = #tpu.pipeline_mode<synchronous>, transform_indices = @transform_4, window_bounds = array<i64: 1, 256>}, {pipeline_mode = #tpu.pipeline_mode<synchronous>, transform_indices = @transform_5, window_bounds = array<i64: 256, 128>}, {pipeline_mode = #tpu.pipeline_mode<synchronous>, transform_indices = @transform_6, window_bounds = array<i64: 1, 128>}, {transform_indices = @transform_7, window_bounds = array<i64: 8, 128>}]} {
    %c0 = arith.constant 0 : index
    %0 = memref.load %arg1[%c0] : memref<1xf32, #tpu.memory_space<smem>>
    %c0_0 = arith.constant 0 : index
    %c0_1 = arith.constant 0 : index
    %1 = vector.load %arg2[%c0_0, %c0_1] : memref<8x16xf32, #tpu.memory_space<vmem>>, vector<8x16xf32>
    %c0_2 = arith.constant 0 : index
    %c0_3 = arith.constant 0 : index
    %2 = vector.load %arg3[%c0_2, %c0_3] : memref<16x256xf32, #tpu.memory_space<vmem>>, vector<16x256xf32>
    %cst = arith.constant dense<0.000000e+00> : vector<8x256xf32>
    %3 = tpu.matmul %1, %2, %cst {dimension_numbers = #tpu.dot_dimension_numbers<[1], [0], [0], [1], [0, 0, 1, 1], [], []>} : vector<8x16xf32>, vector<16x256xf32>, vector<8x256xf32> -> vector<8x256xf32>
    %c0_4 = arith.constant 0 : index
    %c0_5 = arith.constant 0 : index
    %4 = vector.load %arg4[%c0_4, %c0_5] : memref<1x256xf32, #tpu.memory_space<vmem>>, vector<1x256xf32>
    %5 = vector.broadcast %4 : vector<1x256xf32> to vector<8x256xf32>
    %6 = arith.addf %3, %5 : vector<8x256xf32>
    %cst_6 = arith.constant 0.000000e+00 : f32
    %7 = vector.broadcast %cst_6 : f32 to vector<8x256xf32>
    %8 = arith.maximumf %6, %7 : vector<8x256xf32>
    %c0_7 = arith.constant 0 : index
    %c0_8 = arith.constant 0 : index
    %9 = vector.load %arg5[%c0_7, %c0_8] : memref<256x256xf32, #tpu.memory_space<vmem>>, vector<256x256xf32>
    %cst_9 = arith.constant dense<0.000000e+00> : vector<8x256xf32>
    %10 = tpu.matmul %8, %9, %cst_9 {dimension_numbers = #tpu.dot_dimension_numbers<[1], [0], [0], [1], [0, 0, 1, 1], [], []>} : vector<8x256xf32>, vector<256x256xf32>, vector<8x256xf32> -> vector<8x256xf32>
    %c0_10 = arith.constant 0 : index
    %c0_11 = arith.constant 0 : index
    %11 = vector.load %arg6[%c0_10, %c0_11] : memref<1x256xf32, #tpu.memory_space<vmem>>, vector<1x256xf32>
    %12 = vector.broadcast %11 : vector<1x256xf32> to vector<8x256xf32>
    %13 = arith.addf %10, %12 : vector<8x256xf32>
    %cst_12 = arith.constant 0.000000e+00 : f32
    %14 = vector.broadcast %cst_12 : f32 to vector<8x256xf32>
    %15 = arith.maximumf %13, %14 : vector<8x256xf32>
    %c0_13 = arith.constant 0 : index
    %c0_14 = arith.constant 0 : index
    %16 = vector.load %arg7[%c0_13, %c0_14] : memref<256x128xf32, #tpu.memory_space<vmem>>, vector<256x128xf32>
    %cst_15 = arith.constant dense<0.000000e+00> : vector<8x128xf32>
    %17 = tpu.matmul %15, %16, %cst_15 {dimension_numbers = #tpu.dot_dimension_numbers<[1], [0], [0], [1], [0, 0, 1, 1], [], []>} : vector<8x256xf32>, vector<256x128xf32>, vector<8x128xf32> -> vector<8x128xf32>
    %c0_16 = arith.constant 0 : index
    %c0_17 = arith.constant 0 : index
    %18 = vector.load %arg8[%c0_16, %c0_17] : memref<1x128xf32, #tpu.memory_space<vmem>>, vector<1x128xf32>
    %19 = vector.broadcast %18 : vector<1x128xf32> to vector<8x128xf32>
    %20 = arith.addf %17, %19 : vector<8x128xf32>
    %21 = math.tanh %20 : vector<8x128xf32>
    %22 = vector.broadcast %0 : f32 to vector<8x128xf32>
    %23 = arith.mulf %22, %21 : vector<8x128xf32>
    %c0_18 = arith.constant 0 : index
    %c0_19 = arith.constant 0 : index
    %24 = vector.load %arg9[%c0_18, %c0_19] : memref<8x128xf32, #tpu.memory_space<vmem>>, vector<8x128xf32>
    tpu.vector_store %arg9[%c0_18, %c0_19], %23 {strides = array<i32>} : memref<8x128xf32, #tpu.memory_space<vmem>>, vector<8x128xf32>,
    return
  }
  func.func @transform_0(%arg0: i32, %arg1: memref<1xf32, #tpu.memory_space<smem>>) -> (i32, i32) {
    %c0_i32 = arith.constant 0 : i32
    %c0_i32_0 = arith.constant 0 : i32
    return %arg0, %c0_i32 : i32, i32
  }
  func.func @transform_1(%arg0: i32, %arg1: memref<1xf32, #tpu.memory_space<smem>>) -> (i32, i32) {
    %c0_i32 = arith.constant 0 : i32
    %c0_i32_0 = arith.constant 0 : i32
    %c0_i32_1 = arith.constant 0 : i32
    return %c0_i32, %c0_i32_0 : i32, i32
  }
  func.func @transform_2(%arg0: i32, %arg1: memref<1xf32, #tpu.memory_space<smem>>) -> (i32, i32) {
    %c0_i32 = arith.constant 0 : i32
    %c0_i32_0 = arith.constant 0 : i32
    %c0_i32_1 = arith.constant 0 : i32
    return %c0_i32, %c0_i32_0 : i32, i32
  }
  func.func @transform_3(%arg0: i32, %arg1: memref<1xf32, #tpu.memory_space<smem>>) -> (i32, i32) {
    %c0_i32 = arith.constant 0 : i32
    %c0_i32_0 = arith.constant 0 : i32
    %c0_i32_1 = arith.constant 0 : i32
    return %c0_i32, %c0_i32_0 : i32, i32
  }
  func.func @transform_4(%arg0: i32, %arg1: memref<1xf32, #tpu.memory_space<smem>>) -> (i32, i32) {
    %c0_i32 = arith.constant 0 : i32
    %c0_i32_0 = arith.constant 0 : i32
    %c0_i32_1 = arith.constant 0 : i32
    return %c0_i32, %c0_i32_0 : i32, i32
  }
  func.func @transform_5(%arg0: i32, %arg1: memref<1xf32, #tpu.memory_space<smem>>) -> (i32, i32) {
    %c0_i32 = arith.constant 0 : i32
    %c0_i32_0 = arith.constant 0 : i32
    %c0_i32_1 = arith.constant 0 : i32
    return %c0_i32, %c0_i32_0 : i32, i32
  }
  func.func @transform_6(%arg0: i32, %arg1: memref<1xf32, #tpu.memory_space<smem>>) -> (i32, i32) {
    %c0_i32 = arith.constant 0 : i32
    %c0_i32_0 = arith.constant 0 : i32
    %c0_i32_1 = arith.constant 0 : i32
    return %c0_i32, %c0_i32_0 : i32, i32
  }
  func.func @transform_7(%arg0: i32, %arg1: memref<1xf32, #tpu.memory_space<smem>>) -> (i32, i32) {
    %c0_i32 = arith.constant 0 : i32
    %c0_i32_0 = arith.constant 0 : i32
    return %arg0, %c0_i32 : i32, i32
  }
}

</mosaic_0001>

<llo_original>
// kernel: tpu_custom_call.1
$region0: #{tpu_custom_call.1}
  #allocation0 [shape = 'u32[]', space=smem, size = 0x4, offset = 0x4, fixed_abs, tag = 'smem constant byte address 0x4 - core index']
  #allocation1 [shape = 'u32[144,128]{1,0:T(1,128)}', space=vmem, size = 0x12000, scoped, tag = 'internal scratch']
  #allocation2 [shape = 's32[1]{0}', space=sflag, size = 0x4, scoped, tag = 'scoped memory for tpu_custom_call.1']
  #allocation3 [shape = 'f32[1]{0:T(128)S(6)}', space=smem, size = 0x200, scoped, tag = 'prefetched SMEM operand 0']
  %s0 = inlined_call_operand.<no memory space> [shape: f32[1], index: 0, kind: input, shape index: {}]
  %s1 = inlined_call_operand.hbm [shape: f32[8,16], index: 1, kind: input, shape index: {}]
  %s2 = inlined_call_operand.hbm [shape: f32[16,256], index: 2, kind: input, shape index: {}]
  %s3 = inlined_call_operand.vmem [shape: f32[1,256], index: 3, kind: input, shape index: {}]
  %s4 = inlined_call_operand.hbm [shape: f32[256,256], index: 4, kind: input, shape index: {}]
  %s5 = inlined_call_operand.vmem [shape: f32[1,256], index: 5, kind: input, shape index: {}]
  %s6 = inlined_call_operand.hbm [shape: f32[256,128], index: 6, kind: input, shape index: {}]
  %s7 = inlined_call_operand.vmem [shape: f32[1,128], index: 7, kind: input, shape index: {}]
  %s8 = inlined_call_operand.hbm [shape: f32[8,128], index: 8, kind: output, shape index: {}]
  %s9 = sld [smem:[#allocation0]]
  $region54: #{tpu_custom_call.1} parent=0
    _
  %s11 = ssub.s32 1, %s9
  %s12 = scalar_select 0, %s11, %s9
  %13 = sst [smem:[#allocation3]] %s0
  $region1: #{tpu_custom_call.1} parent=0
    #allocation4 [shape = 'u8[4096]{0}', space=vmem, size = 0x1000, scoped, tag = 'input window, operand 1, single buffered']
    #allocation5 [shape = 's32[1]{0}', space=sflag, size = 0x4, scoped, tag = 'scoped memory for tpu_custom_call.1']
    #allocation6 [shape = 's32[1]{0}', space=sflag, size = 0x4, scoped, tag = 'scoped memory for tpu_custom_call.1']
    #allocation7 [shape = 'u8[16384]{0}', space=vmem, size = 0x4000, scoped, tag = 'input window, operand 2, single buffered']
    #allocation8 [shape = 's32[1]{0}', space=sflag, size = 0x4, scoped, tag = 'scoped memory for tpu_custom_call.1']
    #allocation9 [shape = 'u8[262144]{0}', space=vmem, size = 0x40000, scoped, tag = 'input window, operand 4, single buffered']
    #allocation10 [shape = 'u8[131072]{0}', space=vmem, size = 0x20000, scoped, tag = 'input window, operand 6, single buffered']
    #allocation11 [shape = 's32[1]{0}', space=sflag, size = 0x4, scoped, tag = 'scoped memory for tpu_custom_call.1']
    #allocation12 [shape = 'u8[4096]{0}', space=vmem, size = 0x1000, scoped, tag = 'output window, operand 0, single buffered']
    %14 = vsyncpa [#allocation5], 0
    %15 = vsyncpa [#allocation8], 0
    %16 = vsyncpa [#allocation11], 0
    %17 = vsyncpa [#allocation6], 0
    // Predicated region
    $region2: #{tpu_custom_call.1} parent=1 // pred_check
      _
    $region3: #{tpu_custom_call.1} parent=1 // pred_check_branch
      %19 = sbr.rel (0) target = $region5
    $region4: #{tpu_custom_call.1} parent=1 // pred_region
      %s21 = ssub.s32 128, 128
      %22 = vsyncadd [#allocation5], %s21
      %s24 = sshll.u32 [#allocation4], 4
      %s25 = int_to_ptr.vmem [resolvable:$true] %s24
      %27 = dma.hbm_to_vmem [thread:$0]  %s1, 128, %s25, [#allocation5]
    $region5: #{tpu_custom_call.1} parent=1 // pred_fallthru
      _
    // Predicated region
    $region6: #{tpu_custom_call.1} parent=1 // pred_check
      _
    $region7: #{tpu_custom_call.1} parent=1 // pred_check_branch
      %29 = sbr.rel (0) target = $region9
    $region8: #{tpu_custom_call.1} parent=1 // pred_region
      %s31 = ssub.s32 512, 512
      %32 = vsyncadd [#allocation8], %s31
      %s33 = sshll.u32 [#allocation7], 4
      %s34 = int_to_ptr.vmem [resolvable:$true] %s33
      %39 = dma.hbm_to_vmem [thread:$0]  %s2, 512, %s34, [#allocation8], 256, 256, 16
    $region9: #{tpu_custom_call.1} parent=1 // pred_fallthru
      _
    // Predicated region
    $region10: #{tpu_custom_call.1} parent=1 // pred_check
      _
    $region11: #{tpu_custom_call.1} parent=1 // pred_check_branch
      %41 = sbr.rel (0) target = $region13
    $region12: #{tpu_custom_call.1} parent=1 // pred_region
      _
    $region13: #{tpu_custom_call.1} parent=1 // pred_fallthru
      _
    // Predicated region
    $region14: #{tpu_custom_call.1} parent=1 // pred_check
      _
    $region15: #{tpu_custom_call.1} parent=1 // pred_check_branch
      %43 = sbr.rel (0) target = $region17
    $region16: #{tpu_custom_call.1} parent=1 // pred_region
      %s45 = ssub.s32 8192, 8192
      %46 = vsyncadd [#allocation8], %s45
      %s47 = sshll.u32 [#allocation9], 4
      %s48 = int_to_ptr.vmem [resolvable:$true] %s47
      %53 = dma.hbm_to_vmem [thread:$0]  %s4, 8192, %s48, [#allocation8], 256, 256, 16
    $region17: #{tpu_custom_call.1} parent=1 // pred_fallthru
      _
    // Predicated region
    $region18: #{tpu_custom_call.1} parent=1 // pred_check
      _
    $region19: #{tpu_custom_call.1} parent=1 // pred_check_branch
      %55 = sbr.rel (0) target = $region21
    $region20: #{tpu_custom_call.1} parent=1 // pred_region
      _
    $region21: #{tpu_custom_call.1} parent=1 // pred_fallthru
      _
    // Predicated region
    $region22: #{tpu_custom_call.1} parent=1 // pred_check
      _
    $region23: #{tpu_custom_call.1} parent=1 // pred_check_branch
      %57 = sbr.rel (0) target = $region25
    $region24: #{tpu_custom_call.1} parent=1 // pred_region
      %s59 = ssub.s32 4096, 4096
      %60 = vsyncadd [#allocation11], %s59
      %s61 = sshll.u32 [#allocation10], 4
      %s62 = int_to_ptr.vmem [resolvable:$true] %s61
      %67 = dma.hbm_to_vmem [thread:$0]  %s6, 4096, %s62, [#allocation11], 128, 128, 8
    $region25: #{tpu_custom_call.1} parent=1 // pred_fallthru
      _
    // Predicated region
    $region26: #{tpu_custom_call.1} parent=1 // pred_check
      _
    $region27: #{tpu_custom_call.1} parent=1 // pred_check_branch
      %69 = sbr.rel (0) target = $region29
    $region28: #{tpu_custom_call.1} parent=1 // pred_region
      _
    $region29: #{tpu_custom_call.1} parent=1 // pred_fallthru
      _
    // Predicated region
    $region30: #{tpu_custom_call.1} parent=1 // pred_check
      _
    $region31: #{tpu_custom_call.1} parent=1 // pred_check_branch
      %71 = sbr.rel (0) target = $region33
    $region32: #{tpu_custom_call.1} parent=1 // pred_region
      %72 = dma.done [#allocation5], 128
    $region33: #{tpu_custom_call.1} parent=1 // pred_fallthru
      _
    // Predicated region
    $region34: #{tpu_custom_call.1} parent=1 // pred_check
      _
    $region35: #{tpu_custom_call.1} parent=1 // pred_check_branch
      %74 = sbr.rel (0) target = $region37
    $region36: #{tpu_custom_call.1} parent=1 // pred_region
      %75 = dma.done [#allocation8], 512
    $region37: #{tpu_custom_call.1} parent=1 // pred_fallthru
      _
    // Predicated region
    $region38: #{tpu_custom_call.1} parent=1 // pred_check
      _
    $region39: #{tpu_custom_call.1} parent=1 // pred_check_branch
      %77 = sbr.rel (0) target = $region41
    $region40: #{tpu_custom_call.1} parent=1 // pred_region
      %78 = dma.done [#allocation8], 8192
    $region41: #{tpu_custom_call.1} parent=1 // pred_fallthru
      _
    // Predicated region
    $region42: #{tpu_custom_call.1} parent=1 // pred_check
      _
    $region43: #{tpu_custom_call.1} parent=1 // pred_check_branch
      %80 = sbr.rel (0) target = $region45
    $region44: #{tpu_custom_call.1} parent=1 // pred_region
      %81 = dma.done [#allocation11], 4096
    $region45: #{tpu_custom_call.1} parent=1 // pred_fallthru
      _
    %s82 = sld [smem:[#allocation3]]
    %v83 = vld [vmem:[#allocation4] sm:$0xff]
    %v84 = vld [vmem:[#allocation7] sm:$0xff]
    %v85 = vld [vmem:[#allocation7 + $0x8] sm:$0xff]
    %v86 = vld [vmem:[#allocation7 + $0x10] sm:$0xff]
    %v87 = vld [vmem:[#allocation7 + $0x18] sm:$0xff]
    %v88 = vld [vmem:[%s3] sm:$0x3]
    %v90 = vlaneseq
    %v91 = vshrl.u32 %v90, 7
    %v92 = vsub.s32 0, %v91
    %v93 = vrot.slane %v88, %v92
    %v94 = vlaneseq
    %v95 = vshrl.u32 %v94, 7
    %v96 = vsub.s32 1, %v95
    %v97 = vrot.slane %v88, %v96
    %vm100 = vcmask 130048
    %v102 = vsel %vm100, %v83, 0
    %104 = vmatprep.subr.mxu0 %v85
    %105 = vmatpush1.msra.mxu0 %v84
    %106 = vmatprep.subr.mxu0 %v87
    %107 = vmatpush1.msra.mxu0 %v86
    %108 = vmatprep.subr.mxu0 0.0
    %109 = vmatpush1.msra.mxu0 0.0
    %110 = vmatprep.subr.mxu0 0.0
    %111 = vmatpush1.msra.mxu0 0.0
    %112 = vmatprep.subr.mxu0 0.0
    %113 = vmatpush1.msra.mxu0 0.0
    %114 = vmatprep.subr.mxu0 0.0
    %115 = vmatpush1.msra.mxu0 0.0
    %116 = vmatprep.subr.mxu0 0.0
    %117 = vmatpush1.msra.mxu0 0.0
    %118 = vmatprep.subr.mxu0 0.0
    %119 = vmatpush1.msra.mxu0 0.0
    %120 = vmatprep.subr.mxu0 0.0
    %121 = vmatpush1.msra.mxu0 0.0
    %122 = vmatprep.subr.mxu0 0.0
    %123 = vmatpush1.msra.mxu0 0.0
    %124 = vmatprep.subr.mxu0 0.0
    %125 = vmatpush1.msra.mxu0 0.0
    %126 = vmatprep.subr.mxu0 0.0
    %127 = vmatpush1.msra.mxu0 0.0
    %128 = vmatprep.subr.mxu0 0.0
    %129 = vmatpush1.msra.mxu0 0.0
    %130 = vmatprep.subr.mxu0 0.0
    %131 = vmatpush1.msra.mxu0 0.0
    %132 = vmatprep.subr.mxu0 0.0
    %133 = vmatpush1.msra.mxu0 0.0
    %134 = vmatprep.subr.mxu0 0.0
    %135 = vmatpush1.msra.mxu0 0.0
    %136 = vmatprep.subr.mxu0 0.0
    %137 = vmatpush1.msra.mxu0 0.0
    %138 = vmatprep.subr.mxu0 0.0
    %139 = vmatpush1.msra.mxu0 0.0
    %140 = vmatprep.subr.mxu0 0.0
    %141 = vmatpush1.msra.mxu0 0.0
    %142 = vmatprep.subr.mxu0 0.0
    %143 = vmatpush1.msra.mxu0 0.0
    %144 = vmatprep.subr.mxu0 0.0
    %145 = vmatpush1.msra.mxu0 0.0
    %146 = vmatprep.subr.mxu0 0.0
    %147 = vmatpush1.msra.mxu0 0.0
    %148 = vmatprep.subr.mxu0 0.0
    %149 = vmatpush1.msra.mxu0 0.0
    %150 = vmatprep.subr.mxu0 0.0
    %151 = vmatpush1.msra.mxu0 0.0
    %152 = vmatprep.subr.mxu0 0.0
    %153 = vmatpush1.msra.mxu0 0.0
    %154 = vmatprep.subr.mxu0 0.0
    %155 = vmatpush1.msra.mxu0 0.0
    %156 = vmatprep.subr.mxu0 0.0
    %157 = vmatpush1.msra.mxu0 0.0
    %158 = vmatprep.subr.mxu0 0.0
    %159 = vmatpush1.msra.mxu0 0.0
    %160 = vmatprep.subr.mxu0 0.0
    %161 = vmatpush1.msra.mxu0 0.0
    %162 = vmatprep.subr.mxu0 0.0
    %163 = vmatpush1.msra.mxu0 0.0
    %164 = vmatprep.subr.mxu0 0.0
    %165 = vmatpush1.msra.mxu0 0.0
    %166 = vmatprep.subr.mxu0 0.0
    %167 = vmatpush1.msra.mxu0 0.0
    %168 = vmatprep.mubr.f32.mxu0 0.0
    %169 = vmatmul.mubr.f32.gmra.mrb[0].mxu0 %v102
    %v170 = vpop.f32.mrb[0].mxu0
    %v171 = vadd.f32 %v93, %v170
    %v172 = vpop.f32.mrb[0].mxu0
    %v173 = vadd.f32 %v97, %v172
    %174 = vdwg.mxu0
    %v175 = vmax.f32 %v171, 0.0
    %v176 = vmax.f32 %v173, 0.0
    %v177 = vld [vmem:[#allocation9] sm:$0xff]
    %v178 = vld [vmem:[#allocation9 + $0x8] sm:$0xff]
    %v179 = vld [vmem:[#allocation9 + $0x10] sm:$0xff]
    %v180 = vld [vmem:[#allocation9 + $0x18] sm:$0xff]
    %v181 = vld [vmem:[#allocation9 + $0x20] sm:$0xff]
    %v182 = vld [vmem:[#allocation9 + $0x28] sm:$0xff]
    %v183 = vld [vmem:[#allocation9 + $0x30] sm:$0xff]
    %v184 = vld [vmem:[#allocation9 + $0x38] sm:$0xff]
    %v185 = vld [vmem:[#allocation9 + $0x40] sm:$0xff]
    %v186 = vld [vmem:[#allocation9 + $0x48] sm:$0xff]
    %v187 = vld [vmem:[#allocation9 + $0x50] sm:$0xff]
    %v188 = vld [vmem:[#allocation9 + $0x58] sm:$0xff]
    %v189 = vld [vmem:[#allocation9 + $0x60] sm:$0xff]
    %v190 = vld [vmem:[#allocation9 + $0x68] sm:$0xff]
    %v191 = vld [vmem:[#allocation9 + $0x70] sm:$0xff]
    %v192 = vld [vmem:[#allocation9 + $0x78] sm:$0xff]
    %v193 = vld [vmem:[#allocation9 + $0x80] sm:$0xff]
    %v194 = vld [vmem:[#allocation9 + $0x88] sm:$0xff]
    %v195 = vld [vmem:[#allocation9 + $0x90] sm:$0xff]
    %v196 = vld [vmem:[#allocation9 + $0x98] sm:$0xff]
    %v197 = vld [vmem:[#allocation9 + $0xa0] sm:$0xff]
    %v198 = vld [vmem:[#allocation9 + $0xa8] sm:$0xff]
    %v199 = vld [vmem:[#allocation9 + $0xb0] sm:$0xff]
    %v200 = vld [vmem:[#allocation9 + $0xb8] sm:$0xff]
    %v201 = vld [vmem:[#allocation9 + $0xc0] sm:$0xff]
    %v202 = vld [vmem:[#allocation9 + $0xc8] sm:$0xff]
    %v203 = vld [vmem:[#allocation9 + $0xd0] sm:$0xff]
    %v204 = vld [vmem:[#allocation9 + $0xd8] sm:$0xff]
    %v205 = vld [vmem:[#allocation9 + $0xe0] sm:$0xff]
    %v206 = vld [vmem:[#allocation9 + $0xe8] sm:$0xff]
    %v207 = vld [vmem:[#allocation9 + $0xf0] sm:$0xff]
    %v208 = vld [vmem:[#allocation9 + $0xf8] sm:$0xff]
    %v209 = vld [vmem:[#allocation9 + $0x100] sm:$0xff]
    %v210 = vld [vmem:[#allocation9 + $0x108] sm:$0xff]
    %v211 = vld [vmem:[#allocation9 + $0x110] sm:$0xff]
    %v212 = vld [vmem:[#allocation9 + $0x118] sm:$0xff]
    %v213 = vld [vmem:[#allocation9 + $0x120] sm:$0xff]
    %v214 = vld [vmem:[#allocation9 + $0x128] sm:$0xff]
    %v215 = vld [vmem:[#allocation9 + $0x130] sm:$0xff]
    %v216 = vld [vmem:[#allocation9 + $0x138] sm:$0xff]
    %v217 = vld [vmem:[#allocation9 + $0x140] sm:$0xff]
    %v218 = vld [vmem:[#allocation9 + $0x148] sm:$0xff]
    %v219 = vld [vmem:[#allocation9 + $0x150] sm:$0xff]
    %v220 = vld [vmem:[#allocation9 + $0x158] sm:$0xff]
    %v221 = vld [vmem:[#allocation9 + $0x160] sm:$0xff]
    %v222 = vld [vmem:[#allocation9 + $0x168] sm:$0xff]
    %v223 = vld [vmem:[#allocation9 + $0x170] sm:$0xff]
    %v224 = vld [vmem:[#allocation9 + $0x178] sm:$0xff]
    %v225 = vld [vmem:[#allocation9 + $0x180] sm:$0xff]
    %v226 = vld [vmem:[#allocation9 + $0x188] sm:$0xff]
    %v227 = vld [vmem:[#allocation9 + $0x190] sm:$0xff]
    %v228 = vld [vmem:[#allocation9 + $0x198] sm:$0xff]
    %v229 = vld [vmem:[#allocation9 + $0x1a0] sm:$0xff]
    %v230 = vld [vmem:[#allocation9 + $0x1a8] sm:$0xff]
    %v231 = vld [vmem:[#allocation9 + $0x1b0] sm:$0xff]
    %v232 = vld [vmem:[#allocation9 + $0x1b8] sm:$0xff]
    %v233 = vld [vmem:[#allocation9 + $0x1c0] sm:$0xff]
    %v234 = vld [vmem:[#allocation9 + $0x1c8] sm:$0xff]
    %v235 = vld [vmem:[#allocation9 + $0x1d0] sm:$0xff]
    %v236 = vld [vmem:[#allocation9 + $0x1d8] sm:$0xff]
    %v237 = vld [vmem:[#allocation9 + $0x1e0] sm:$0xff]
    %v238 = vld [vmem:[#allocation9 + $0x1e8] sm:$0xff]
    %v239 = vld [vmem:[#allocation9 + $0x1f0] sm:$0xff]
    %v240 = vld [vmem:[#allocation9 + $0x1f8] sm:$0xff]
    %v241 = vld [vmem:[%s5] sm:$0x3]
    %v243 = vlaneseq
    %v244 = vshrl.u32 %v243, 7
    %v245 = vsub.s32 0, %v244
    %v246 = vrot.slane %v241, %v245
    %v247 = vlaneseq
    %v248 = vshrl.u32 %v247, 7
    %v249 = vsub.s32 1, %v248
    %v250 = vrot.slane %v241, %v249
    %253 = vmatprep.subr.mxu0 %v178
    %254 = vmatpush1.msra.mxu0 %v177
    %255 = vmatprep.subr.mxu0 %v180
    %256 = vmatpush1.msra.mxu0 %v179
    %257 = vmatprep.subr.mxu0 %v182
    %258 = vmatpush1.msra.mxu0 %v181
    %259 = vmatprep.subr.mxu0 %v184
    %260 = vmatpush1.msra.mxu0 %v183
    %261 = vmatprep.subr.mxu0 %v186
    %262 = vmatpush1.msra.mxu0 %v185
    %263 = vmatprep.subr.mxu0 %v188
    %264 = vmatpush1.msra.mxu0 %v187
    %265 = vmatprep.subr.mxu0 %v190
    %266 = vmatpush1.msra.mxu0 %v189
    %267 = vmatprep.subr.mxu0 %v192
    %268 = vmatpush1.msra.mxu0 %v191
    %269 = vmatprep.subr.mxu0 %v194
    %270 = vmatpush1.msra.mxu0 %v193
    %271 = vmatprep.subr.mxu0 %v196
    %272 = vmatpush1.msra.mxu0 %v195
    %273 = vmatprep.subr.mxu0 %v198
    %274 = vmatpush1.msra.mxu0 %v197
    %275 = vmatprep.subr.mxu0 %v200
    %276 = vmatpush1.msra.mxu0 %v199
    %277 = vmatprep.subr.mxu0 %v202
    %278 = vmatpush1.msra.mxu0 %v201
    %279 = vmatprep.subr.mxu0 %v204
    %280 = vmatpush1.msra.mxu0 %v203
    %281 = vmatprep.subr.mxu0 %v206
    %282 = vmatpush1.msra.mxu0 %v205
    %283 = vmatprep.subr.mxu0 %v208
    %284 = vmatpush1.msra.mxu0 %v207
    %285 = vmatprep.subr.mxu0 %v210
    %286 = vmatpush1.msra.mxu0 %v209
    %287 = vmatprep.subr.mxu0 %v212
    %288 = vmatpush1.msra.mxu0 %v211
    %289 = vmatprep.subr.mxu0 %v214
    %290 = vmatpush1.msra.mxu0 %v213
    %291 = vmatprep.subr.mxu0 %v216
    %292 = vmatpush1.msra.mxu0 %v215
    %293 = vmatprep.subr.mxu0 %v218
    %294 = vmatpush1.msra.mxu0 %v217
    %295 = vmatprep.subr.mxu0 %v220
    %296 = vmatpush1.msra.mxu0 %v219
    %297 = vmatprep.subr.mxu0 %v222
    %298 = vmatpush1.msra.mxu0 %v221
    %299 = vmatprep.subr.mxu0 %v224
    %300 = vmatpush1.msra.mxu0 %v223
    %301 = vmatprep.subr.mxu0 %v226
    %302 = vmatpush1.msra.mxu0 %v225
    %303 = vmatprep.subr.mxu0 %v228
    %304 = vmatpush1.msra.mxu0 %v227
    %305 = vmatprep.subr.mxu0 %v230
    %306 = vmatpush1.msra.mxu0 %v229
    %307 = vmatprep.subr.mxu0 %v232
    %308 = vmatpush1.msra.mxu0 %v231
    %309 = vmatprep.subr.mxu0 %v234
    %310 = vmatpush1.msra.mxu0 %v233
    %311 = vmatprep.subr.mxu0 %v236
    %312 = vmatpush1.msra.mxu0 %v235
    %313 = vmatprep.subr.mxu0 %v238
    %314 = vmatpush1.msra.mxu0 %v237
    %315 = vmatprep.subr.mxu0 %v240
    %316 = vmatpush1.msra.mxu0 %v239
    %317 = vmatprep.mubr.f32.mxu0 %v176
    %318 = vmatmul.mubr.f32.gmra.mrb[0].mxu0 %v175
    %v319 = vpop.f32.mrb[0].mxu0
    %v320 = vadd.f32 %v246, %v319
    %v321 = vpop.f32.mrb[0].mxu0
    %v322 = vadd.f32 %v250, %v321
    %323 = vdwg.mxu0
    %v324 = vmax.f32 %v320, 0.0
    %v325 = vmax.f32 %v322, 0.0
    %v326 = vld [vmem:[#allocation10] sm:$0xff]
    %v327 = vld [vmem:[#allocation10 + $0x8] sm:$0xff]
    %v328 = vld [vmem:[#allocation10 + $0x10] sm:$0xff]
    %v329 = vld [vmem:[#allocation10 + $0x18] sm:$0xff]
    %v330 = vld [vmem:[#allocation10 + $0x20] sm:$0xff]
    %v331 = vld [vmem:[#allocation10 + $0x28] sm:$0xff]
    %v332 = vld [vmem:[#allocation10 + $0x30] sm:$0xff]
    %v333 = vld [vmem:[#allocation10 + $0x38] sm:$0xff]
    %v334 = vld [vmem:[#allocation10 + $0x40] sm:$0xff]
    %v335 = vld [vmem:[#allocation10 + $0x48] sm:$0xff]
    %v336 = vld [vmem:[#allocation10 + $0x50] sm:$0xff]
    %v337 = vld [vmem:[#allocation10 + $0x58] sm:$0xff]
    %v338 = vld [vmem:[#allocation10 + $0x60] sm:$0xff]
    %v339 = vld [vmem:[#allocation10 + $0x68] sm:$0xff]
    %v340 = vld [vmem:[#allocation10 + $0x70] sm:$0xff]
    %v341 = vld [vmem:[#allocation10 + $0x78] sm:$0xff]
    %v342 = vld [vmem:[#allocation10 + $0x80] sm:$0xff]
    %v343 = vld [vmem:[#allocation10 + $0x88] sm:$0xff]
    %v344 = vld [vmem:[#allocation10 + $0x90] sm:$0xff]
    %v345 = vld [vmem:[#allocation10 + $0x98] sm:$0xff]
    %v346 = vld [vmem:[#allocation10 + $0xa0] sm:$0xff]
    %v347 = vld [vmem:[#allocation10 + $0xa8] sm:$0xff]
    %v348 = vld [vmem:[#allocation10 + $0xb0] sm:$0xff]
    %v349 = vld [vmem:[#allocation10 + $0xb8] sm:$0xff]
    %v350 = vld [vmem:[#allocation10 + $0xc0] sm:$0xff]
    %v351 = vld [vmem:[#allocation10 + $0xc8] sm:$0xff]
    %v352 = vld [vmem:[#allocation10 + $0xd0] sm:$0xff]
    %v353 = vld [vmem:[#allocation10 + $0xd8] sm:$0xff]
    %v354 = vld [vmem:[#allocation10 + $0xe0] sm:$0xff]
    %v355 = vld [vmem:[#allocation10 + $0xe8] sm:$0xff]
    %v356 = vld [vmem:[#allocation10 + $0xf0] sm:$0xff]
    %v357 = vld [vmem:[#allocation10 + $0xf8] sm:$0xff]
    %v358 = vld [vmem:[%s7] sm:$0x1]
    %v360 = vlaneseq
    %v361 = vshrl.u32 %v360, 7
    %v362 = vsub.s32 0, %v361
    %v363 = vrot.slane %v358, %v362
    %365 = vmatprep.subr.mxu0 0.0
    %366 = vmatpush1.msra.mxu0 %v326
    %367 = vmatprep.subr.mxu0 0.0
    %368 = vmatpush1.msra.mxu0 %v327
    %369 = vmatprep.subr.mxu0 0.0
    %370 = vmatpush1.msra.mxu0 %v328
    %371 = vmatprep.subr.mxu0 0.0
    %372 = vmatpush1.msra.mxu0 %v329
    %373 = vmatprep.subr.mxu0 0.0
    %374 = vmatpush1.msra.mxu0 %v330
    %375 = vmatprep.subr.mxu0 0.0
    %376 = vmatpush1.msra.mxu0 %v331
    %377 = vmatprep.subr.mxu0 0.0
    %378 = vmatpush1.msra.mxu0 %v332
    %379 = vmatprep.subr.mxu0 0.0
    %380 = vmatpush1.msra.mxu0 %v333
    %381 = vmatprep.subr.mxu0 0.0
    %382 = vmatpush1.msra.mxu0 %v334
    %383 = vmatprep.subr.mxu0 0.0
    %384 = vmatpush1.msra.mxu0 %v335
    %385 = vmatprep.subr.mxu0 0.0
    %386 = vmatpush1.msra.mxu0 %v336
    %387 = vmatprep.subr.mxu0 0.0
    %388 = vmatpush1.msra.mxu0 %v337
    %389 = vmatprep.subr.mxu0 0.0
    %390 = vmatpush1.msra.mxu0 %v338
    %391 = vmatprep.subr.mxu0 0.0
    %392 = vmatpush1.msra.mxu0 %v339
    %393 = vmatprep.subr.mxu0 0.0
    %394 = vmatpush1.msra.mxu0 %v340
    %395 = vmatprep.subr.mxu0 0.0
    %396 = vmatpush1.msra.mxu0 %v341
    %397 = vmatprep.subr.mxu0 0.0
    %398 = vmatpush1.msra.mxu0 %v342
    %399 = vmatprep.subr.mxu0 0.0
    %400 = vmatpush1.msra.mxu0 %v343
    %401 = vmatprep.subr.mxu0 0.0
    %402 = vmatpush1.msra.mxu0 %v344
    %403 = vmatprep.subr.mxu0 0.0
    %404 = vmatpush1.msra.mxu0 %v345
    %405 = vmatprep.subr.mxu0 0.0
    %406 = vmatpush1.msra.mxu0 %v346
    %407 = vmatprep.subr.mxu0 0.0
    %408 = vmatpush1.msra.mxu0 %v347
    %409 = vmatprep.subr.mxu0 0.0
    %410 = vmatpush1.msra.mxu0 %v348
    %411 = vmatprep.subr.mxu0 0.0
    %412 = vmatpush1.msra.mxu0 %v349
    %413 = vmatprep.subr.mxu0 0.0
    %414 = vmatpush1.msra.mxu0 %v350
    %415 = vmatprep.subr.mxu0 0.0
    %416 = vmatpush1.msra.mxu0 %v351
    %417 = vmatprep.subr.mxu0 0.0
    %418 = vmatpush1.msra.mxu0 %v352
    %419 = vmatprep.subr.mxu0 0.0
    %420 = vmatpush1.msra.mxu0 %v353
    %421 = vmatprep.subr.mxu0 0.0
    %422 = vmatpush1.msra.mxu0 %v354
    %423 = vmatprep.subr.mxu0 0.0
    %424 = vmatpush1.msra.mxu0 %v355
    %425 = vmatprep.subr.mxu0 0.0
    %426 = vmatpush1.msra.mxu0 %v356
    %427 = vmatprep.subr.mxu0 0.0
    %428 = vmatpush1.msra.mxu0 %v357
    %429 = vmatprep.mubr.f32.mxu0 %v325
    %430 = vmatmul.mubr.f32.gmra.mrb[0].mxu0 %v324
    %v431 = vpop.f32.mrb[0].mxu0
    %v432 = vadd.f32 %v363, %v431
    %v433 = vpop.f32.mrb[0].mxu0
    %434 = vdwg.mxu0
    %v435 = vtanh.pop %v432
    %v436 = vstv %s82
    %v437 = vmul.f32 %v436, %v435
    %438 = vst [vmem:[#allocation12] sm:$0xff] %v437
    // Predicated region
    $region46: #{tpu_custom_call.1} parent=1 // pred_check
      _
    $region47: #{tpu_custom_call.1} parent=1 // pred_check_branch
      %440 = sbr.rel (0) target = $region49
    $region48: #{tpu_custom_call.1} parent=1 // pred_region
      %s442 = ssub.s32 128, 128
      %443 = vsyncadd [#allocation6], %s442
      %s445 = sshll.u32 [#allocation12], 4
      %s446 = int_to_ptr.vmem [resolvable:$true] %s445
      %448 = dma.vmem_to_hbm [thread:$0]  %s446, 128, %s8, [#allocation6]
    $region49: #{tpu_custom_call.1} parent=1 // pred_fallthru
      _
    // Predicated region
    $region50: #{tpu_custom_call.1} parent=1 // pred_check
      _
    $region51: #{tpu_custom_call.1} parent=1 // pred_check_branch
      %450 = sbr.rel (0) target = $region53
    $region52: #{tpu_custom_call.1} parent=1 // pred_region
      %451 = dma.done [#allocation6], 128
    $region53: #{tpu_custom_call.1} parent=1 // pred_fallthru
      _
    %452 = vsyncpa [#allocation5], 1
    %453 = vsyncpa [#allocation8], 1
    %454 = vsyncpa [#allocation11], 1
    %455 = vsyncpa [#allocation6], 1

// kernel: tpu_custom_call.1
$region0: #{tpu_custom_call.1}
  #allocation0 [shape = 'u32[]', space=smem, size = 0x4, offset = 0x4, fixed_abs, tag = 'smem constant byte address 0x4 - core index']
  #allocation1 [shape = 'u32[144,128]{1,0:T(1,128)}', space=vmem, size = 0x12000, scoped, tag = 'internal scratch']
  #allocation2 [shape = 's32[1]{0}', space=sflag, size = 0x4, scoped, tag = 'scoped memory for tpu_custom_call.1']
  #allocation3 [shape = 'f32[1]{0:T(128)S(6)}', space=smem, size = 0x200, scoped, tag = 'prefetched SMEM operand 0']
  %s0 = inlined_call_operand.<no memory space> [shape: f32[1], index: 0, kind: input, shape index: {}]
  %s1 = inlined_call_operand.hbm [shape: f32[8,16], index: 1, kind: input, shape index: {}]
  %s2 = inlined_call_operand.hbm [shape: f32[16,256], index: 2, kind: input, shape index: {}]
  %s3 = inlined_call_operand.vmem [shape: f32[1,256], index: 3, kind: input, shape index: {}]
  %s4 = inlined_call_operand.hbm [shape: f32[256,256], index: 4, kind: input, shape index: {}]
  %s5 = inlined_call_operand.vmem [shape: f32[1,256], index: 5, kind: input, shape index: {}]
  %s6 = inlined_call_operand.hbm [shape: f32[256,128], index: 6, kind: input, shape index: {}]
  %s7 = inlined_call_operand.vmem [shape: f32[1,128], index: 7, kind: input, shape index: {}]
  %s8 = inlined_call_operand.hbm [shape: f32[8,128], index: 8, kind: output, shape index: {}]
  %s9 = sld [smem:[#allocation0]]
  $region54: #{tpu_custom_call.1} parent=0
    _
  %s11 = ssub.s32 1, %s9
  %s12 = scalar_select 0, %s11, %s9
  %13 = sst [smem:[#allocation3]] %s0
  $region1: #{tpu_custom_call.1} parent=0
    #allocation4 [shape = 'u8[4096]{0}', space=vmem, size = 0x1000, scoped, tag = 'input window, operand 1, single buffered']
    #allocation5 [shape = 's32[1]{0}', space=sflag, size = 0x4, scoped, tag = 'scoped memory for tpu_custom_call.1']
    #allocation6 [shape = 's32[1]{0}', space=sflag, size = 0x4, scoped, tag = 'scoped memory for tpu_custom_call.1']
    #allocation7 [shape = 'u8[16384]{0}', space=vmem, size = 0x4000, scoped, tag = 'input window, operand 2, single buffered']
    #allocation8 [shape = 's32[1]{0}', space=sflag, size = 0x4, scoped, tag = 'scoped memory for tpu_custom_call.1']
    #allocation9 [shape = 'u8[262144]{0}', space=vmem, size = 0x40000, scoped, tag = 'input window, operand 4, single buffered']
    #allocation10 [shape = 'u8[131072]{0}', space=vmem, size = 0x20000, scoped, tag = 'input window, operand 6, single buffered']
    #allocation11 [shape = 's32[1]{0}', space=sflag, size = 0x4, scoped, tag = 'scoped memory for tpu_custom_call.1']
    #allocation12 [shape = 'u8[4096]{0}', space=vmem, size = 0x1000, scoped, tag = 'output window, operand 0, single buffered']
    %14 = vsyncpa [#allocation5], 0
    %15 = vsyncpa [#allocation8], 0
    %16 = vsyncpa [#allocation11], 0
    %17 = vsyncpa [#allocation6], 0
    // Predicated region
    $region2: #{tpu_custom_call.1} parent=1 // pred_check
      _
    $region3: #{tpu_custom_call.1} parent=1 // pred_check_branch
      %19 = sbr.rel (0) target = $region5
    $region4: #{tpu_custom_call.1} parent=1 // pred_region
      %s21 = ssub.s32 128, 128
      %22 = vsyncadd [#allocation5], %s21
      %s24 = sshll.u32 [#allocation4], 4
      %s25 = int_to_ptr.vmem [resolvable:$true] %s24
      %27 = dma.hbm_to_vmem [thread:$0]  %s1, 128, %s25, [#allocation5]
    $region5: #{tpu_custom_call.1} parent=1 // pred_fallthru
      _
    // Predicated region
    $region6: #{tpu_custom_call.1} parent=1 // pred_check
      _
    $region7: #{tpu_custom_call.1} parent=1 // pred_check_branch
      %29 = sbr.rel (0) target = $region9
    $region8: #{tpu_custom_call.1} parent=1 // pred_region
      %s31 = ssub.s32 512, 512
      %32 = vsyncadd [#allocation8], %s31
      %s33 = sshll.u32 [#allocation7], 4
      %s34 = int_to_ptr.vmem [resolvable:$true] %s33
      %39 = dma.hbm_to_vmem [thread:$0]  %s2, 512, %s34, [#allocation8], 256, 256, 16
    $region9: #{tpu_custom_call.1} parent=1 // pred_fallthru
      _
    // Predicated region
    $region10: #{tpu_custom_call.1} parent=1 // pred_check
      _
    $region11: #{tpu_custom_call.1} parent=1 // pred_check_branch
      %41 = sbr.rel (0) target = $region13
    $region12: #{tpu_custom_call.1} parent=1 // pred_region
      _
    $region13: #{tpu_custom_call.1} parent=1 // pred_fallthru
      _
    // Predicated region
    $region14: #{tpu_custom_call.1} parent=1 // pred_check
      _
    $region15: #{tpu_custom_call.1} parent=1 // pred_check_branch
      %43 = sbr.rel (0) target = $region17
    $region16: #{tpu_custom_call.1} parent=1 // pred_region
      %s45 = ssub.s32 8192, 8192
      %46 = vsyncadd [#allocation8], %s45
      %s47 = sshll.u32 [#allocation9], 4
      %s48 = int_to_ptr.vmem [resolvable:$true] %s47
      %53 = dma.hbm_to_vmem [thread:$0]  %s4, 8192, %s48, [#allocation8], 256, 256, 16
    $region17: #{tpu_custom_call.1} parent=1 // pred_fallthru
      _
    // Predicated region
    $region18: #{tpu_custom_call.1} parent=1 // pred_check
      _
    $region19: #{tpu_custom_call.1} parent=1 // pred_check_branch
      %55 = sbr.rel (0) target = $region21
    $region20: #{tpu_custom_call.1} parent=1 // pred_region
      _
    $region21: #{tpu_custom_call.1} parent=1 // pred_fallthru
      _
    // Predicated region
    $region22: #{tpu_custom_call.1} parent=1 // pred_check
      _
    $region23: #{tpu_custom_call.1} parent=1 // pred_check_branch
      %57 = sbr.rel (0) target = $region25
    $region24: #{tpu_custom_call.1} parent=1 // pred_region
      %s59 = ssub.s32 4096, 4096
      %60 = vsyncadd [#allocation11], %s59
      %s61 = sshll.u32 [#allocation10], 4
      %s62 = int_to_ptr.vmem [resolvable:$true] %s61
      %67 = dma.hbm_to_vmem [thread:$0]  %s6, 4096, %s62, [#allocation11], 128, 128, 8
    $region25: #{tpu_custom_call.1} parent=1 // pred_fallthru
      _
    // Predicated region
    $region26: #{tpu_custom_call.1} parent=1 // pred_check
      _
    $region27: #{tpu_custom_call.1} parent=1 // pred_check_branch
      %69 = sbr.rel (0) target = $region29
    $region28: #{tpu_custom_call.1} parent=1 // pred_region
      _
    $region29: #{tpu_custom_call.1} parent=1 // pred_fallthru
      _
    // Predicated region
    $region30: #{tpu_custom_call.1} parent=1 // pred_check
      _
    $region31: #{tpu_custom_call.1} parent=1 // pred_check_branch
      %71 = sbr.rel (0) target = $region33
    $region32: #{tpu_custom_call.1} parent=1 // pred_region
      %72 = dma.done [#allocation5], 128
    $region33: #{tpu_custom_call.1} parent=1 // pred_fallthru
      _
    // Predicated region
    $region34: #{tpu_custom_call.1} parent=1 // pred_check
      _
    $region35: #{tpu_custom_call.1} parent=1 // pred_check_branch
      %74 = sbr.rel (0) target = $region37
    $region36: #{tpu_custom_call.1} parent=1 // pred_region
      %75 = dma.done [#allocation8], 512
    $region37: #{tpu_custom_call.1} parent=1 // pred_fallthru
      _
    // Predicated region
    $region38: #{tpu_custom_call.1} parent=1 // pred_check
      _
    $region39: #{tpu_custom_call.1} parent=1 // pred_check_branch
      %77 = sbr.rel (0) target = $region41
    $region40: #{tpu_custom_call.1} parent=1 // pred_region
      %78 = dma.done [#allocation8], 8192
    $region41: #{tpu_custom_call.1} parent=1 // pred_fallthru
      _
    // Predicated region
    $region42: #{tpu_custom_call.1} parent=1 // pred_check
      _
    $region43: #{tpu_custom_call.1} parent=1 // pred_check_branch
      %80 = sbr.rel (0) target = $region45
    $region44: #{tpu_custom_call.1} parent=1 // pred_region
      %81 = dma.done [#allocation11], 4096
    $region45: #{tpu_custom_call.1} parent=1 // pred_fallthru
      _
    %s82 = sld [smem:[#allocation3]]
    %v83 = vld [vmem:[#allocation4] sm:$0xff]
    %v84 = vld [vmem:[#allocation7] sm:$0xff]
    %v85 = vld [vmem:[#allocation7 + $0x8] sm:$0xff]
    %v86 = vld [vmem:[#allocation7 + $0x10] sm:$0xff]
    %v87 = vld [vmem:[#allocation7 + $0x18] sm:$0xff]
    %v88 = vld [vmem:[%s3] sm:$0x3]
    %v90 = vlaneseq
    %v91 = vshrl.u32 %v90, 7
    %v92 = vsub.s32 0, %v91
    %v93 = vrot.slane %v88, %v92
    %v94 = vlaneseq
    %v95 = vshrl.u32 %v94, 7
    %v96 = vsub.s32 1, %v95
    %v97 = vrot.slane %v88, %v96
    %vm100 = vcmask 130048
    %v102 = vsel %vm100, %v83, 0
    %104 = vmatprep.subr.mxu0 %v85
    %105 = vmatpush1.msra.mxu0 %v84
    %106 = vmatprep.subr.mxu0 %v87
    %107 = vmatpush1.msra.mxu0 %v86
    %108 = vmatprep.subr.mxu0 0.0
    %109 = vmatpush1.msra.mxu0 0.0
    %110 = vmatprep.subr.mxu0 0.0
    %111 = vmatpush1.msra.mxu0 0.0
    %112 = vmatprep.subr.mxu0 0.0
    %113 = vmatpush1.msra.mxu0 0.0
    %114 = vmatprep.subr.mxu0 0.0
    %115 = vmatpush1.msra.mxu0 0.0
    %116 = vmatprep.subr.mxu0 0.0
    %117 = vmatpush1.msra.mxu0 0.0
    %118 = vmatprep.subr.mxu0 0.0
    %119 = vmatpush1.msra.mxu0 0.0
    %120 = vmatprep.subr.mxu0 0.0
    %121 = vmatpush1.msra.mxu0 0.0
    %122 = vmatprep.subr.mxu0 0.0
    %123 = vmatpush1.msra.mxu0 0.0
    %124 = vmatprep.subr.mxu0 0.0
    %125 = vmatpush1.msra.mxu0 0.0
    %126 = vmatprep.subr.mxu0 0.0
    %127 = vmatpush1.msra.mxu0 0.0
    %128 = vmatprep.subr.mxu0 0.0
    %129 = vmatpush1.msra.mxu0 0.0
    %130 = vmatprep.subr.mxu0 0.0
    %131 = vmatpush1.msra.mxu0 0.0
    %132 = vmatprep.subr.mxu0 0.0
    %133 = vmatpush1.msra.mxu0 0.0
    %134 = vmatprep.subr.mxu0 0.0
    %135 = vmatpush1.msra.mxu0 0.0
    %136 = vmatprep.subr.mxu0 0.0
    %137 = vmatpush1.msra.mxu0 0.0
    %138 = vmatprep.subr.mxu0 0.0
    %139 = vmatpush1.msra.mxu0 0.0
    %140 = vmatprep.subr.mxu0 0.0
    %141 = vmatpush1.msra.mxu0 0.0
    %142 = vmatprep.subr.mxu0 0.0
    %143 = vmatpush1.msra.mxu0 0.0
    %144 = vmatprep.subr.mxu0 0.0
    %145 = vmatpush1.msra.mxu0 0.0
    %146 = vmatprep.subr.mxu0 0.0
    %147 = vmatpush1.msra.mxu0 0.0
    %148 = vmatprep.subr.mxu0 0.0
    %149 = vmatpush1.msra.mxu0 0.0
    %150 = vmatprep.subr.mxu0 0.0
    %151 = vmatpush1.msra.mxu0 0.0
    %152 = vmatprep.subr.mxu0 0.0
    %153 = vmatpush1.msra.mxu0 0.0
    %154 = vmatprep.subr.mxu0 0.0
    %155 = vmatpush1.msra.mxu0 0.0
    %156 = vmatprep.subr.mxu0 0.0
    %157 = vmatpush1.msra.mxu0 0.0
    %158 = vmatprep.subr.mxu0 0.0
    %159 = vmatpush1.msra.mxu0 0.0
    %160 = vmatprep.subr.mxu0 0.0
    %161 = vmatpush1.msra.mxu0 0.0
    %162 = vmatprep.subr.mxu0 0.0
    %163 = vmatpush1.msra.mxu0 0.0
    %164 = vmatprep.subr.mxu0 0.0
    %165 = vmatpush1.msra.mxu0 0.0
    %166 = vmatprep.subr.mxu0 0.0
    %167 = vmatpush1.msra.mxu0 0.0
    %168 = vmatprep.mubr.f32.mxu0 0.0
    %169 = vmatmul.mubr.f32.gmra.mrb[0].mxu0 %v102
    %v170 = vpop.f32.mrb[0].mxu0
    %v171 = vadd.f32 %v93, %v170
    %v172 = vpop.f32.mrb[0].mxu0
    %v173 = vadd.f32 %v97, %v172
    %174 = vdwg.mxu0
    %v175 = vmax.f32 %v171, 0.0
    %v176 = vmax.f32 %v173, 0.0
    %v177 = vld [vmem:[#allocation9] sm:$0xff]
    %v178 = vld [vmem:[#allocation9 + $0x8] sm:$0xff]
    %v179 = vld [vmem:[#allocation9 + $0x10] sm:$0xff]
    %v180 = vld [vmem:[#allocation9 + $0x18] sm:$0xff]
    %v181 = vld [vmem:[#allocation9 + $0x20] sm:$0xff]
    %v182 = vld [vmem:[#allocation9 + $0x28] sm:$0xff]
    %v183 = vld [vmem:[#allocation9 + $0x30] sm:$0xff]
    %v184 = vld [vmem:[#allocation9 + $0x38] sm:$0xff]
    %v185 = vld [vmem:[#allocation9 + $0x40] sm:$0xff]
    %v186 = vld [vmem:[#allocation9 + $0x48] sm:$0xff]
    %v187 = vld [vmem:[#allocation9 + $0x50] sm:$0xff]
    %v188 = vld [vmem:[#allocation9 + $0x58] sm:$0xff]
    %v189 = vld [vmem:[#allocation9 + $0x60] sm:$0xff]
    %v190 = vld [vmem:[#allocation9 + $0x68] sm:$0xff]
    %v191 = vld [vmem:[#allocation9 + $0x70] sm:$0xff]
    %v192 = vld [vmem:[#allocation9 + $0x78] sm:$0xff]
    %v193 = vld [vmem:[#allocation9 + $0x80] sm:$0xff]
    %v194 = vld [vmem:[#allocation9 + $0x88] sm:$0xff]
    %v195 = vld [vmem:[#allocation9 + $0x90] sm:$0xff]
    %v196 = vld [vmem:[#allocation9 + $0x98] sm:$0xff]
    %v197 = vld [vmem:[#allocation9 + $0xa0] sm:$0xff]
    %v198 = vld [vmem:[#allocation9 + $0xa8] sm:$0xff]
    %v199 = vld [vmem:[#allocation9 + $0xb0] sm:$0xff]
    %v200 = vld [vmem:[#allocation9 + $0xb8] sm:$0xff]
    %v201 = vld [vmem:[#allocation9 + $0xc0] sm:$0xff]
    %v202 = vld [vmem:[#allocation9 + $0xc8] sm:$0xff]
    %v203 = vld [vmem:[#allocation9 + $0xd0] sm:$0xff]
    %v204 = vld [vmem:[#allocation9 + $0xd8] sm:$0xff]
    %v205 = vld [vmem:[#allocation9 + $0xe0] sm:$0xff]
    %v206 = vld [vmem:[#allocation9 + $0xe8] sm:$0xff]
    %v207 = vld [vmem:[#allocation9 + $0xf0] sm:$0xff]
    %v208 = vld [vmem:[#allocation9 + $0xf8] sm:$0xff]
    %v209 = vld [vmem:[#allocation9 + $0x100] sm:$0xff]
    %v210 = vld [vmem:[#allocation9 + $0x108] sm:$0xff]
    %v211 = vld [vmem:[#allocation9 + $0x110] sm:$0xff]
    %v212 = vld [vmem:[#allocation9 + $0x118] sm:$0xff]
    %v213 = vld [vmem:[#allocation9 + $0x120] sm:$0xff]
    %v214 = vld [vmem:[#allocation9 + $0x128] sm:$0xff]
    %v215 = vld [vmem:[#allocation9 + $0x130] sm:$0xff]
    %v216 = vld [vmem:[#allocation9 + $0x138] sm:$0xff]
    %v217 = vld [vmem:[#allocation9 + $0x140] sm:$0xff]
    %v218 = vld [vmem:[#allocation9 + $0x148] sm:$0xff]
    %v219 = vld [vmem:[#allocation9 + $0x150] sm:$0xff]
    %v220 = vld [vmem:[#allocation9 + $0x158] sm:$0xff]
    %v221 = vld [vmem:[#allocation9 + $0x160] sm:$0xff]
    %v222 = vld [vmem:[#allocation9 + $0x168] sm:$0xff]
    %v223 = vld [vmem:[#allocation9 + $0x170] sm:$0xff]
    %v224 = vld [vmem:[#allocation9 + $0x178] sm:$0xff]
    %v225 = vld [vmem:[#allocation9 + $0x180] sm:$0xff]
    %v226 = vld [vmem:[#allocation9 + $0x188] sm:$0xff]
    %v227 = vld [vmem:[#allocation9 + $0x190] sm:$0xff]
    %v228 = vld [vmem:[#allocation9 + $0x198] sm:$0xff]
    %v229 = vld [vmem:[#allocation9 + $0x1a0] sm:$0xff]
    %v230 = vld [vmem:[#allocation9 + $0x1a8] sm:$0xff]
    %v231 = vld [vmem:[#allocation9 + $0x1b0] sm:$0xff]
    %v232 = vld [vmem:[#allocation9 + $0x1b8] sm:$0xff]
    %v233 = vld [vmem:[#allocation9 + $0x1c0] sm:$0xff]
    %v234 = vld [vmem:[#allocation9 + $0x1c8] sm:$0xff]
    %v235 = vld [vmem:[#allocation9 + $0x1d0] sm:$0xff]
    %v236 = vld [vmem:[#allocation9 + $0x1d8] sm:$0xff]
    %v237 = vld [vmem:[#allocation9 + $0x1e0] sm:$0xff]
    %v238 = vld [vmem:[#allocation9 + $0x1e8] sm:$0xff]
    %v239 = vld [vmem:[#allocation9 + $0x1f0] sm:$0xff]
    %v240 = vld [vmem:[#allocation9 + $0x1f8] sm:$0xff]
    %v241 = vld [vmem:[%s5] sm:$0x3]
    %v243 = vlaneseq
    %v244 = vshrl.u32 %v243, 7
    %v245 = vsub.s32 0, %v244
    %v246 = vrot.slane %v241, %v245
    %v247 = vlaneseq
    %v248 = vshrl.u32 %v247, 7
    %v249 = vsub.s32 1, %v248
    %v250 = vrot.slane %v241, %v249
    %253 = vmatprep.subr.mxu0 %v178
    %254 = vmatpush1.msra.mxu0 %v177
    %255 = vmatprep.subr.mxu0 %v180
    %256 = vmatpush1.msra.mxu0 %v179
    %257 = vmatprep.subr.mxu0 %v182
    %258 = vmatpush1.msra.mxu0 %v181
    %259 = vmatprep.subr.mxu0 %v184
    %260 = vmatpush1.msra.mxu0 %v183
    %261 = vmatprep.subr.mxu0 %v186
    %262 = vmatpush1.msra.mxu0 %v185
    %263 = vmatprep.subr.mxu0 %v188
    %264 = vmatpush1.msra.mxu0 %v187
    %265 = vmatprep.subr.mxu0 %v190
    %266 = vmatpush1.msra.mxu0 %v189
    %267 = vmatprep.subr.mxu0 %v192
    %268 = vmatpush1.msra.mxu0 %v191
    %269 = vmatprep.subr.mxu0 %v194
    %270 = vmatpush1.msra.mxu0 %v193
    %271 = vmatprep.subr.mxu0 %v196
    %272 = vmatpush1.msra.mxu0 %v195
    %273 = vmatprep.subr.mxu0 %v198
    %274 = vmatpush1.msra.mxu0 %v197
    %275 = vmatprep.subr.mxu0 %v200
    %276 = vmatpush1.msra.mxu0 %v199
    %277 = vmatprep.subr.mxu0 %v202
    %278 = vmatpush1.msra.mxu0 %v201
    %279 = vmatprep.subr.mxu0 %v204
    %280 = vmatpush1.msra.mxu0 %v203
    %281 = vmatprep.subr.mxu0 %v206
    %282 = vmatpush1.msra.mxu0 %v205
    %283 = vmatprep.subr.mxu0 %v208
    %284 = vmatpush1.msra.mxu0 %v207
    %285 = vmatprep.subr.mxu0 %v210
    %286 = vmatpush1.msra.mxu0 %v209
    %287 = vmatprep.subr.mxu0 %v212
    %288 = vmatpush1.msra.mxu0 %v211
    %289 = vmatprep.subr.mxu0 %v214
    %290 = vmatpush1.msra.mxu0 %v213
    %291 = vmatprep.subr.mxu0 %v216
    %292 = vmatpush1.msra.mxu0 %v215
    %293 = vmatprep.subr.mxu0 %v218
    %294 = vmatpush1.msra.mxu0 %v217
    %295 = vmatprep.subr.mxu0 %v220
    %296 = vmatpush1.msra.mxu0 %v219
    %297 = vmatprep.subr.mxu0 %v222
    %298 = vmatpush1.msra.mxu0 %v221
    %299 = vmatprep.subr.mxu0 %v224
    %300 = vmatpush1.msra.mxu0 %v223
    %301 = vmatprep.subr.mxu0 %v226
    %302 = vmatpush1.msra.mxu0 %v225
    %303 = vmatprep.subr.mxu0 %v228
    %304 = vmatpush1.msra.mxu0 %v227
    %305 = vmatprep.subr.mxu0 %v230
    %306 = vmatpush1.msra.mxu0 %v229
    %307 = vmatprep.subr.mxu0 %v232
    %308 = vmatpush1.msra.mxu0 %v231
    %309 = vmatprep.subr.mxu0 %v234
    %310 = vmatpush1.msra.mxu0 %v233
    %311 = vmatprep.subr.mxu0 %v236
    %312 = vmatpush1.msra.mxu0 %v235
    %313 = vmatprep.subr.mxu0 %v238
    %314 = vmatpush1.msra.mxu0 %v237
    %315 = vmatprep.subr.mxu0 %v240
    %316 = vmatpush1.msra.mxu0 %v239
    %317 = vmatprep.mubr.f32.mxu0 %v176
    %318 = vmatmul.mubr.f32.gmra.mrb[0].mxu0 %v175
    %v319 = vpop.f32.mrb[0].mxu0
    %v320 = vadd.f32 %v246, %v319
    %v321 = vpop.f32.mrb[0].mxu0
    %v322 = vadd.f32 %v250, %v321
    %323 = vdwg.mxu0
    %v324 = vmax.f32 %v320, 0.0
    %v325 = vmax.f32 %v322, 0.0
    %v326 = vld [vmem:[#allocation10] sm:$0xff]
    %v327 = vld [vmem:[#allocation10 + $0x8] sm:$0xff]
    %v328 = vld [vmem:[#allocation10 + $0x10] sm:$0xff]
    %v329 = vld [vmem:[#allocation10 + $0x18] sm:$0xff]
    %v330 = vld [vmem:[#allocation10 + $0x20] sm:$0xff]
    %v331 = vld [vmem:[#allocation10 + $0x28] sm:$0xff]
    %v332 = vld [vmem:[#allocation10 + $0x30] sm:$0xff]
    %v333 = vld [vmem:[#allocation10 + $0x38] sm:$0xff]
    %v334 = vld [vmem:[#allocation10 + $0x40] sm:$0xff]
    %v335 = vld [vmem:[#allocation10 + $0x48] sm:$0xff]
    %v336 = vld [vmem:[#allocation10 + $0x50] sm:$0xff]
    %v337 = vld [vmem:[#allocation10 + $0x58] sm:$0xff]
    %v338 = vld [vmem:[#allocation10 + $0x60] sm:$0xff]
    %v339 = vld [vmem:[#allocation10 + $0x68] sm:$0xff]
    %v340 = vld [vmem:[#allocation10 + $0x70] sm:$0xff]
    %v341 = vld [vmem:[#allocation10 + $0x78] sm:$0xff]
    %v342 = vld [vmem:[#allocation10 + $0x80] sm:$0xff]
    %v343 = vld [vmem:[#allocation10 + $0x88] sm:$0xff]
    %v344 = vld [vmem:[#allocation10 + $0x90] sm:$0xff]
    %v345 = vld [vmem:[#allocation10 + $0x98] sm:$0xff]
    %v346 = vld [vmem:[#allocation10 + $0xa0] sm:$0xff]
    %v347 = vld [vmem:[#allocation10 + $0xa8] sm:$0xff]
    %v348 = vld [vmem:[#allocation10 + $0xb0] sm:$0xff]
    %v349 = vld [vmem:[#allocation10 + $0xb8] sm:$0xff]
    %v350 = vld [vmem:[#allocation10 + $0xc0] sm:$0xff]
    %v351 = vld [vmem:[#allocation10 + $0xc8] sm:$0xff]
    %v352 = vld [vmem:[#allocation10 + $0xd0] sm:$0xff]
    %v353 = vld [vmem:[#allocation10 + $0xd8] sm:$0xff]
    %v354 = vld [vmem:[#allocation10 + $0xe0] sm:$0xff]
    %v355 = vld [vmem:[#allocation10 + $0xe8] sm:$0xff]
    %v356 = vld [vmem:[#allocation10 + $0xf0] sm:$0xff]
    %v357 = vld [vmem:[#allocation10 + $0xf8] sm:$0xff]
    %v358 = vld [vmem:[%s7] sm:$0x1]
    %v360 = vlaneseq
    %v361 = vshrl.u32 %v360, 7
    %v362 = vsub.s32 0, %v361
    %v363 = vrot.slane %v358, %v362
    %365 = vmatprep.subr.mxu0 0.0
    %366 = vmatpush1.msra.mxu0 %v326
    %367 = vmatprep.subr.mxu0 0.0
    %368 = vmatpush1.msra.mxu0 %v327
    %369 = vmatprep.subr.mxu0 0.0
    %370 = vmatpush1.msra.mxu0 %v328
    %371 = vmatprep.subr.mxu0 0.0
    %372 = vmatpush1.msra.mxu0 %v329
    %373 = vmatprep.subr.mxu0 0.0
    %374 = vmatpush1.msra.mxu0 %v330
    %375 = vmatprep.subr.mxu0 0.0
    %376 = vmatpush1.msra.mxu0 %v331
    %377 = vmatprep.subr.mxu0 0.0
    %378 = vmatpush1.msra.mxu0 %v332
    %379 = vmatprep.subr.mxu0 0.0
    %380 = vmatpush1.msra.mxu0 %v333
    %381 = vmatprep.subr.mxu0 0.0
    %382 = vmatpush1.msra.mxu0 %v334
    %383 = vmatprep.subr.mxu0 0.0
    %384 = vmatpush1.msra.mxu0 %v335
    %385 = vmatprep.subr.mxu0 0.0
    %386 = vmatpush1.msra.mxu0 %v336
    %387 = vmatprep.subr.mxu0 0.0
    %388 = vmatpush1.msra.mxu0 %v337
    %389 = vmatprep.subr.mxu0 0.0
    %390 = vmatpush1.msra.mxu0 %v338
    %391 = vmatprep.subr.mxu0 0.0
    %392 = vmatpush1.msra.mxu0 %v339
    %393 = vmatprep.subr.mxu0 0.0
    %394 = vmatpush1.msra.mxu0 %v340
    %395 = vmatprep.subr.mxu0 0.0
    %396 = vmatpush1.msra.mxu0 %v341
    %397 = vmatprep.subr.mxu0 0.0
    %398 = vmatpush1.msra.mxu0 %v342
    %399 = vmatprep.subr.mxu0 0.0
    %400 = vmatpush1.msra.mxu0 %v343
    %401 = vmatprep.subr.mxu0 0.0
    %402 = vmatpush1.msra.mxu0 %v344
    %403 = vmatprep.subr.mxu0 0.0
    %404 = vmatpush1.msra.mxu0 %v345
    %405 = vmatprep.subr.mxu0 0.0
    %406 = vmatpush1.msra.mxu0 %v346
    %407 = vmatprep.subr.mxu0 0.0
    %408 = vmatpush1.msra.mxu0 %v347
    %409 = vmatprep.subr.mxu0 0.0
    %410 = vmatpush1.msra.mxu0 %v348
    %411 = vmatprep.subr.mxu0 0.0
    %412 = vmatpush1.msra.mxu0 %v349
    %413 = vmatprep.subr.mxu0 0.0
    %414 = vmatpush1.msra.mxu0 %v350
    %415 = vmatprep.subr.mxu0 0.0
    %416 = vmatpush1.msra.mxu0 %v351
    %417 = vmatprep.subr.mxu0 0.0
    %418 = vmatpush1.msra.mxu0 %v352
    %419 = vmatprep.subr.mxu0 0.0
    %420 = vmatpush1.msra.mxu0 %v353
    %421 = vmatprep.subr.mxu0 0.0
    %422 = vmatpush1.msra.mxu0 %v354
    %423 = vmatprep.subr.mxu0 0.0
    %424 = vmatpush1.msra.mxu0 %v355
    %425 = vmatprep.subr.mxu0 0.0
    %426 = vmatpush1.msra.mxu0 %v356
    %427 = vmatprep.subr.mxu0 0.0
    %428 = vmatpush1.msra.mxu0 %v357
    %429 = vmatprep.mubr.f32.mxu0 %v325
    %430 = vmatmul.mubr.f32.gmra.mrb[0].mxu0 %v324
    %v431 = vpop.f32.mrb[0].mxu0
    %v432 = vadd.f32 %v363, %v431
    %v433 = vpop.f32.mrb[0].mxu0
    %434 = vdwg.mxu0
    %v435 = vtanh.pop %v432
    %v436 = vstv %s82
    %v437 = vmul.f32 %v436, %v435
    %438 = vst [vmem:[#allocation12] sm:$0xff] %v437
    // Predicated region
    $region46: #{tpu_custom_call.1} parent=1 // pred_check
      _
    $region47: #{tpu_custom_call.1} parent=1 // pred_check_branch
      %440 = sbr.rel (0) target = $region49
    $region48: #{tpu_custom_call.1} parent=1 // pred_region
      %s442 = ssub.s32 128, 128
      %443 = vsyncadd [#allocation6], %s442
      %s445 = sshll.u32 [#allocation12], 4
      %s446 = int_to_ptr.vmem [resolvable:$true] %s445
      %448 = dma.vmem_to_hbm [thread:$0]  %s446, 128, %s8, [#allocation6]
    $region49: #{tpu_custom_call.1} parent=1 // pred_fallthru
      _
    // Predicated region
    $region50: #{tpu_custom_call.1} parent=1 // pred_check
      _
    $region51: #{tpu_custom_call.1} parent=1 // pred_check_branch
      %450 = sbr.rel (0) target = $region53
    $region52: #{tpu_custom_call.1} parent=1 // pred_region
      %451 = dma.done [#allocation6], 128
    $region53: #{tpu_custom_call.1} parent=1 // pred_fallthru
      _
    %452 = vsyncpa [#allocation5], 1
    %453 = vsyncpa [#allocation8], 1
    %454 = vsyncpa [#allocation11], 1
    %455 = vsyncpa [#allocation6], 1

</llo_original>
